<compile_context>
chip_gen: v7x
topology: tpu7x:2x2x1
jax: 0.10.0
libtpu: 0.0.40
codegen_flags: <defaults>
</compile_context>

<pallas_src>
import functools

import jax
import jax.numpy as jnp
from jax.experimental import pallas as pl
from jax.experimental.pallas import tpu as pltpu

HIDDEN = 768          # BERT hidden size
OUT_FEATURES = 256    # module default out_features
LN_EPS = 1e-5

_MAX_TILE_M = 1024    # rows per grid step (multiple of 128); safe on v5e VMEM


def _round_up(x, mult):
    return (x + mult - 1) // mult * mult


def _choose_tile_m(m):
    """Tile rows: multiple of 128, capped at 1024; >=2 grid steps for medium M
    so both v7x TensorCores get work via the parallel grid axis."""
    if m <= 128:
        return 128
    half = _round_up((m + 1) // 2, 128)
    return min(_MAX_TILE_M, half)


def _proj_ln_kernel(x_ref, w_ref, p_ref, o_ref):
    # x_ref: [TM, 768] f32 (cast to bf16 in-VMEM just before the MXU)
    # w_ref: [768, N]  bf16 (resident; block index never changes)
    # p_ref: [3, N]    f32 = (bias, gamma, beta) packed -> one small DMA
    # o_ref: [TM, N]   f32 or bf16 (dtype-driven store)
    x_bf16 = x_ref[...].astype(jnp.bfloat16)
    # Linear: y = x @ W + b   (f32 accumulation on the MXU)
    y = jnp.dot(x_bf16, w_ref[...], preferred_element_type=jnp.float32)
    y = y + p_ref[0:1, :]
    # LayerNorm over last dim (biased variance, matches torch.nn.LayerNorm).
    # Cross-lane sums go to the XLU, rsqrt to the EUP -> off the MXU/VALU path.
    inv_n = jnp.float32(1.0 / y.shape[-1])
    mean = jnp.sum(y, axis=-1, keepdims=True) * inv_n
    d = y - mean
    var = jnp.sum(d * d, axis=-1, keepdims=True) * inv_n
    y_hat = d * jax.lax.rsqrt(var + jnp.float32(LN_EPS))
    o_ref[...] = (y_hat * p_ref[1:2, :] + p_ref[2:3, :]).astype(o_ref.dtype)


@functools.partial(jax.jit, static_argnames=("out_dtype",))
def proj_layernorm(x, w_bf16, packed_params, out_dtype=jnp.float32):
    """x: [M, 768] (f32 or bf16) -> [M, N] out_dtype.  Fused Linear+LayerNorm."""
    m, k = x.shape
    assert k == HIDDEN
    n = w_bf16.shape[1]

    tile_m = _choose_tile_m(m)
    grid = (pl.cdiv(m, tile_m),)   # ragged M -> masked partial last block

    out = pl.pallas_call(
        _proj_ln_kernel,
        out_shape=jax.ShapeDtypeStruct((m, n), out_dtype),
        grid_spec=pltpu.PrefetchScalarGridSpec(
            num_scalar_prefetch=0,
            grid=grid,
            in_specs=[
                pl.BlockSpec((tile_m, k), lambda i: (i, 0)),   # x tile
                pl.BlockSpec((k, n), lambda i: (0, 0)),        # W resident bf16
                pl.BlockSpec((3, n), lambda i: (0, 0)),        # bias/gamma/beta
            ],
            out_specs=pl.BlockSpec((tile_m, n), lambda i: (i, 0)),
        ),
        compiler_params=pltpu.CompilerParams(
            dimension_semantics=("parallel",)),
    )(x, w_bf16, packed_params)
    return out


def make_params(key, out_features=OUT_FEATURES):
    """Matches weight_init(): xavier_normal_ Linear weight, zero Linear bias;
    LayerNorm defaults (gamma=1, beta=0).  W stored in bf16 for the MXU;
    bias/gamma/beta packed into one (3, N) f32 array."""
    std = (2.0 / (HIDDEN + out_features)) ** 0.5
    w = jax.random.normal(key, (HIDDEN, out_features), jnp.float32) * std
    packed = jnp.stack([
        jnp.zeros((out_features,), jnp.float32),   # Linear bias
        jnp.ones((out_features,), jnp.float32),    # LN gamma
        jnp.zeros((out_features,), jnp.float32),   # LN beta
    ], axis=0)
    return w.astype(jnp.bfloat16), packed, w       # keep f32 W for reference


def language_encoder_forward(pooler_output, params, global_pooling=True,
                             attention_mask=None, last_hidden_state=None,
                             out_dtype=jnp.float32):
    """Mirrors LanguageEncoder.forward after the (emulated) backbone call."""
    w_bf16, packed, _ = params
    if global_pooling:
        z = proj_layernorm(pooler_output, w_bf16, packed,
                           out_dtype=out_dtype)                  # [B, out]
        return z, None
    else:
        bsz, seq, _ = last_hidden_state.shape
        flat = last_hidden_state.reshape(bsz * seq, HIDDEN)      # view, no copy
        z = proj_layernorm(flat, w_bf16, packed,
                           out_dtype=out_dtype).reshape(bsz, seq, -1)
        return z, attention_mask


if __name__ == "__main__":
    key = jax.random.PRNGKey(0)
    k_param, k_pool, k_hid = jax.random.split(key, 3)

    batch, seq = 8, 8
    params = make_params(k_param)
    w_bf16, packed, w_f32 = params

    # Emulated BERT outputs (deterministic).
    pooler_output = jax.random.normal(k_pool, (batch, HIDDEN), jnp.float32)
    last_hidden_state = jax.random.normal(k_hid, (batch, seq, HIDDEN),
                                          jnp.float32)
    attention_mask = jnp.ones((batch, seq), jnp.int32)

    # global_pooling=True path (module default): M=8 -> one masked 128-row tile.
    z, z_mask = language_encoder_forward(pooler_output, params,
                                         global_pooling=True)
    z = jax.block_until_ready(z)
    assert z.shape == (batch, OUT_FEATURES) and z_mask is None

    # global_pooling=False path (per-token projection): M=64 -> one 128 tile.
    z_tok, mask = language_encoder_forward(
        pooler_output, params, global_pooling=False,
        attention_mask=attention_mask, last_hidden_state=last_hidden_state)
    z_tok = jax.block_until_ready(z_tok)
    assert z_tok.shape == (batch, seq, OUT_FEATURES)
    assert mask.shape == (batch, seq)

    # Optional bf16-output path (halves output-store HBM bytes).
    z_bf16, _ = language_encoder_forward(pooler_output, params,
                                         global_pooling=True,
                                         out_dtype=jnp.bfloat16)
    z_bf16 = jax.block_until_ready(z_bf16)
    assert z_bf16.dtype == jnp.bfloat16 and z_bf16.shape == (batch, OUT_FEATURES)

    # Correctness check vs. plain-JAX f32 reference (Linear + LayerNorm).
    # Tolerance loosened because matmul inputs are bf16 (accumulation is f32).
    bias = packed[0][None, :]
    gamma = packed[1][None, :]
    beta = packed[2][None, :]
    ref = pooler_output @ w_f32 + bias
    mu = ref.mean(-1, keepdims=True)
    var = ((ref - mu) ** 2).mean(-1, keepdims=True)
    ref = (ref - mu) / jnp.sqrt(var + LN_EPS) * gamma + beta
    assert jnp.allclose(z, ref, atol=2e-2, rtol=2e-2)
    assert jnp.allclose(z_bf16.astype(jnp.float32), ref, atol=4e-2, rtol=4e-2)

    ref_tok = last_hidden_state.reshape(-1, HIDDEN) @ w_f32 + bias
    mu = ref_tok.mean(-1, keepdims=True)
    var = ((ref_tok - mu) ** 2).mean(-1, keepdims=True)
    ref_tok = ((ref_tok - mu) / jnp.sqrt(var + LN_EPS) * gamma + beta)
    ref_tok = ref_tok.reshape(batch, seq, OUT_FEATURES)
    assert jnp.allclose(z_tok, ref_tok, atol=2e-2, rtol=2e-2)

    print("KERNEL_OK")
</pallas_src>

<mosaic_0001>
module attributes {stable_mosaic.version = 11 : i64} {
  func.func @_proj_ln_kernel(%arg0: i32, %arg1: memref<128x768xf32, #tpu.memory_space<vmem>>, %arg2: memref<768x256xbf16, #tpu.memory_space<vmem>>, %arg3: memref<3x256xf32, #tpu.memory_space<vmem>>, %arg4: memref<128x256xf32, #tpu.memory_space<vmem>>) attributes {dimension_semantics = [#tpu.dimension_semantics<parallel>], iteration_bounds = array<i64: 1>, scalar_prefetch = 0 : i64, scratch_operands = 0 : i64, tpu.core_type = #tpu.core_type<tc>, window_params = [{transform_indices = @transform_0, window_bounds = array<i64: 128, 768>}, {pipeline_mode = #tpu.pipeline_mode<synchronous>, transform_indices = @transform_1, window_bounds = array<i64: 768, 256>}, {pipeline_mode = #tpu.pipeline_mode<synchronous>, transform_indices = @transform_2, window_bounds = array<i64: 3, 256>}, {transform_indices = @transform_3, window_bounds = array<i64: 128, 256>}]} {
    %c0 = arith.constant 0 : index
    %c0_0 = arith.constant 0 : index
    %0 = vector.load %arg1[%c0, %c0_0] : memref<128x768xf32, #tpu.memory_space<vmem>>, vector<128x768xf32>
    %1 = arith.truncf %0 : vector<128x768xf32> to vector<128x768xbf16>
    %c0_1 = arith.constant 0 : index
    %c0_2 = arith.constant 0 : index
    %2 = vector.load %arg2[%c0_1, %c0_2] : memref<768x256xbf16, #tpu.memory_space<vmem>>, vector<768x256xbf16>
    %cst = arith.constant dense<0.000000e+00> : vector<128x256xf32>
    %3 = tpu.matmul %1, %2, %cst {dimension_numbers = #tpu.dot_dimension_numbers<[1], [0], [0], [1], [0, 0, 1, 1], [], []>} : vector<128x768xbf16>, vector<768x256xbf16>, vector<128x256xf32> -> vector<128x256xf32>
    %c0_3 = arith.constant 0 : index
    %c0_4 = arith.constant 0 : index
    %4 = vector.load %arg3[%c0_3, %c0_4] : memref<3x256xf32, #tpu.memory_space<vmem>>, vector<1x256xf32>
    %5 = vector.broadcast %4 : vector<1x256xf32> to vector<128x256xf32>
    %6 = arith.addf %3, %5 : vector<128x256xf32>
    %cst_5 = arith.constant dense<0.000000e+00> : vector<128xf32>
    %7 = vector.multi_reduction <add>, %6, %cst_5 [1] : vector<128x256xf32> to vector<128xf32>
    %8 = vector.shape_cast %7 : vector<128xf32> to vector<128x1xf32>
    %cst_6 = arith.constant 3.906250e-03 : f32
    %9 = vector.broadcast %cst_6 : f32 to vector<128x1xf32>
    %10 = arith.mulf %8, %9 : vector<128x1xf32>
    %11 = vector.broadcast %10 : vector<128x1xf32> to vector<128x256xf32>
    %12 = arith.subf %6, %11 : vector<128x256xf32>
    %13 = arith.mulf %12, %12 : vector<128x256xf32>
    %cst_7 = arith.constant dense<0.000000e+00> : vector<128xf32>
    %14 = vector.multi_reduction <add>, %13, %cst_7 [1] : vector<128x256xf32> to vector<128xf32>
    %15 = vector.shape_cast %14 : vector<128xf32> to vector<128x1xf32>
    %cst_8 = arith.constant 3.906250e-03 : f32
    %16 = vector.broadcast %cst_8 : f32 to vector<128x1xf32>
    %17 = arith.mulf %15, %16 : vector<128x1xf32>
    %cst_9 = arith.constant 9.99999974E-6 : f32
    %18 = vector.broadcast %cst_9 : f32 to vector<128x1xf32>
    %19 = arith.addf %17, %18 : vector<128x1xf32>
    %20 = math.rsqrt %19 : vector<128x1xf32>
    %21 = vector.broadcast %20 : vector<128x1xf32> to vector<128x256xf32>
    %22 = arith.mulf %12, %21 : vector<128x256xf32>
    %c1 = arith.constant 1 : index
    %c0_10 = arith.constant 0 : index
    %23 = vector.load %arg3[%c1, %c0_10] : memref<3x256xf32, #tpu.memory_space<vmem>>, vector<1x256xf32>
    %24 = vector.broadcast %23 : vector<1x256xf32> to vector<128x256xf32>
    %25 = arith.mulf %22, %24 : vector<128x256xf32>
    %c2 = arith.constant 2 : index
    %c0_11 = arith.constant 0 : index
    %26 = vector.load %arg3[%c2, %c0_11] : memref<3x256xf32, #tpu.memory_space<vmem>>, vector<1x256xf32>
    %27 = vector.broadcast %26 : vector<1x256xf32> to vector<128x256xf32>
    %28 = arith.addf %25, %27 : vector<128x256xf32>
    %c0_12 = arith.constant 0 : index
    %c0_13 = arith.constant 0 : index
    %29 = vector.load %arg4[%c0_12, %c0_13] : memref<128x256xf32, #tpu.memory_space<vmem>>, vector<128x256xf32>
    tpu.vector_store %arg4[%c0_12, %c0_13], %28 {strides = array<i32>} : memref<128x256xf32, #tpu.memory_space<vmem>>, vector<128x256xf32>,
    return
  }
  func.func @transform_0(%arg0: i32) -> (i32, i32) {
    %c0_i32 = arith.constant 0 : i32
    %c0_i32_0 = arith.constant 0 : i32
    return %arg0, %c0_i32 : i32, i32
  }
  func.func @transform_1(%arg0: i32) -> (i32, i32) {
    %c0_i32 = arith.constant 0 : i32
    %c0_i32_0 = arith.constant 0 : i32
    %c0_i32_1 = arith.constant 0 : i32
    return %c0_i32, %c0_i32_0 : i32, i32
  }
  func.func @transform_2(%arg0: i32) -> (i32, i32) {
    %c0_i32 = arith.constant 0 : i32
    %c0_i32_0 = arith.constant 0 : i32
    %c0_i32_1 = arith.constant 0 : i32
    return %c0_i32, %c0_i32_0 : i32, i32
  }
  func.func @transform_3(%arg0: i32) -> (i32, i32) {
    %c0_i32 = arith.constant 0 : i32
    %c0_i32_0 = arith.constant 0 : i32
    return %arg0, %c0_i32 : i32, i32
  }
}

</mosaic_0001>

<llo_original>
// kernel: proj_layernorm.1
$region0: #{proj_layernorm.1}
  #allocation0 [shape = 'u32[]', space=smem, size = 0x4, offset = 0x4, fixed_abs, tag = 'smem constant byte address 0x4 - core index']
  #allocation1 [shape = 'u32[144,128]{1,0:T(1,128)}', space=vmem, size = 0x12000, scoped, tag = 'internal scratch']
  %s0 = inlined_call_operand.hbm [shape: f32[8,768], index: 0, kind: input, shape index: {}]
  %s1 = inlined_call_operand.hbm [shape: bf16[768,256], index: 1, kind: input, shape index: {}]
  %s2 = inlined_call_operand.hbm [shape: f32[3,256], index: 2, kind: input, shape index: {}]
  %s3 = inlined_call_operand.hbm [shape: f32[8,256], index: 3, kind: output, shape index: {}]
  %s4 = sld [smem:[#allocation0]]
  $region34: #{proj_layernorm.1} parent=0
    _
  %s6 = ssub.s32 1, %s4
  %s7 = scalar_select 0, %s6, %s4
  $region1: #{proj_layernorm.1} parent=0
    #allocation2 [shape = 'u8[393216]{0}', space=vmem, size = 0x60000, scoped, tag = 'input window, operand 0, single buffered']
    #allocation3 [shape = 's32[1]{0}', space=sflag, size = 0x4, scoped, tag = 'scoped memory for proj_layernorm.1']
    #allocation4 [shape = 's32[1]{0}', space=sflag, size = 0x4, scoped, tag = 'scoped memory for proj_layernorm.1']
    #allocation5 [shape = 'u8[393216]{0}', space=vmem, size = 0x60000, scoped, tag = 'input window, operand 1, single buffered']
    #allocation6 [shape = 's32[1]{0}', space=sflag, size = 0x4, scoped, tag = 'scoped memory for proj_layernorm.1']
    #allocation7 [shape = 'u8[4096]{0}', space=vmem, size = 0x1000, scoped, tag = 'input window, operand 2, single buffered']
    #allocation8 [shape = 'u8[131072]{0}', space=vmem, size = 0x20000, scoped, tag = 'output window, operand 0, single buffered']
    %8 = vsyncpa [#allocation3], 0
    %9 = vsyncpa [#allocation6], 0
    %10 = vsyncpa [#allocation4], 0
    // Predicated region
    $region2: #{proj_layernorm.1} parent=1 // pred_check
      _
    $region3: #{proj_layernorm.1} parent=1 // pred_check_branch
      %12 = sbr.rel (0) target = $region5
    $region4: #{proj_layernorm.1} parent=1 // pred_region
      %s14 = ssub.s32 12288, 768
      %15 = vsyncadd [#allocation3], %s14
      %s16 = sshll.u32 [#allocation2], 4
      %s17 = int_to_ptr.vmem [resolvable:$true] %s16
      %22 = dma.hbm_to_vmem [thread:$0]  %s0, 768, %s17, [#allocation3], 768, 768, 48
    $region5: #{proj_layernorm.1} parent=1 // pred_fallthru
      _
    // Predicated region
    $region6: #{proj_layernorm.1} parent=1 // pred_check
      _
    $region7: #{proj_layernorm.1} parent=1 // pred_check_branch
      %24 = sbr.rel (0) target = $region9
    $region8: #{proj_layernorm.1} parent=1 // pred_region
      %s26 = ssub.s32 12288, 12288
      %27 = vsyncadd [#allocation6], %s26
      %s28 = sshll.u32 [#allocation5], 4
      %s29 = int_to_ptr.vmem [resolvable:$true] %s28
      %34 = dma.hbm_to_vmem [thread:$0]  %s1, 12288, %s29, [#allocation6], 128, 128, 8
    $region9: #{proj_layernorm.1} parent=1 // pred_fallthru
      _
    // Predicated region
    $region10: #{proj_layernorm.1} parent=1 // pred_check
      _
    $region11: #{proj_layernorm.1} parent=1 // pred_check_branch
      %36 = sbr.rel (0) target = $region13
    $region12: #{proj_layernorm.1} parent=1 // pred_region
      %s38 = ssub.s32 128, 128
      %39 = vsyncadd [#allocation6], %s38
      %s41 = sshll.u32 [#allocation7], 4
      %s42 = int_to_ptr.vmem [resolvable:$true] %s41
      %44 = dma.hbm_to_vmem [thread:$0]  %s2, 128, %s42, [#allocation6]
    $region13: #{proj_layernorm.1} parent=1 // pred_fallthru
      _
    // Predicated region
    $region14: #{proj_layernorm.1} parent=1 // pred_check
      _
    $region15: #{proj_layernorm.1} parent=1 // pred_check_branch
      %46 = sbr.rel (0) target = $region17
    $region16: #{proj_layernorm.1} parent=1 // pred_region
      %47 = dma.done [#allocation3], 12288
    $region17: #{proj_layernorm.1} parent=1 // pred_fallthru
      _
    // Predicated region
    $region18: #{proj_layernorm.1} parent=1 // pred_check
      _
    $region19: #{proj_layernorm.1} parent=1 // pred_check_branch
      %49 = sbr.rel (0) target = $region21
    $region20: #{proj_layernorm.1} parent=1 // pred_region
      %50 = dma.done [#allocation6], 12288
    $region21: #{proj_layernorm.1} parent=1 // pred_fallthru
      _
    // Predicated region
    $region22: #{proj_layernorm.1} parent=1 // pred_check
      _
    $region23: #{proj_layernorm.1} parent=1 // pred_check_branch
      %52 = sbr.rel (0) target = $region25
    $region24: #{proj_layernorm.1} parent=1 // pred_region
      %53 = dma.done [#allocation6], 128
    $region25: #{proj_layernorm.1} parent=1 // pred_fallthru
      _
    %v54 = vld [vmem:[#allocation2] sm:$0xff]
    %v55 = vld [vmem:[#allocation2 + $0x8] sm:$0xff]
    %v56 = vld [vmem:[#allocation2 + $0x10] sm:$0xff]
    %v57 = vld [vmem:[#allocation2 + $0x18] sm:$0xff]
    %v58 = vld [vmem:[#allocation2 + $0x20] sm:$0xff]
    %v59 = vld [vmem:[#allocation2 + $0x28] sm:$0xff]
    %v60 = vld [vmem:[#allocation2 + $0x30] sm:$0xff]
    %v61 = vld [vmem:[#allocation2 + $0x38] sm:$0xff]
    %v62 = vld [vmem:[#allocation2 + $0x40] sm:$0xff]
    %v63 = vld [vmem:[#allocation2 + $0x48] sm:$0xff]
    %v64 = vld [vmem:[#allocation2 + $0x50] sm:$0xff]
    %v65 = vld [vmem:[#allocation2 + $0x58] sm:$0xff]
    %v66 = vld [vmem:[#allocation2 + $0x60] sm:$0xff]
    %v67 = vld [vmem:[#allocation2 + $0x68] sm:$0xff]
    %v68 = vld [vmem:[#allocation2 + $0x70] sm:$0xff]
    %v69 = vld [vmem:[#allocation2 + $0x78] sm:$0xff]
    %v70 = vld [vmem:[#allocation2 + $0x80] sm:$0xff]
    %v71 = vld [vmem:[#allocation2 + $0x88] sm:$0xff]
    %v72 = vld [vmem:[#allocation2 + $0x90] sm:$0xff]
    %v73 = vld [vmem:[#allocation2 + $0x98] sm:$0xff]
    %v74 = vld [vmem:[#allocation2 + $0xa0] sm:$0xff]
    %v75 = vld [vmem:[#allocation2 + $0xa8] sm:$0xff]
    %v76 = vld [vmem:[#allocation2 + $0xb0] sm:$0xff]
    %v77 = vld [vmem:[#allocation2 + $0xb8] sm:$0xff]
    %v78 = vld [vmem:[#allocation2 + $0xc0] sm:$0xff]
    %v79 = vld [vmem:[#allocation2 + $0xc8] sm:$0xff]
    %v80 = vld [vmem:[#allocation2 + $0xd0] sm:$0xff]
    %v81 = vld [vmem:[#allocation2 + $0xd8] sm:$0xff]
    %v82 = vld [vmem:[#allocation2 + $0xe0] sm:$0xff]
    %v83 = vld [vmem:[#allocation2 + $0xe8] sm:$0xff]
    %v84 = vld [vmem:[#allocation2 + $0xf0] sm:$0xff]
    %v85 = vld [vmem:[#allocation2 + $0xf8] sm:$0xff]
    %v86 = vld [vmem:[#allocation2 + $0x100] sm:$0xff]
    %v87 = vld [vmem:[#allocation2 + $0x108] sm:$0xff]
    %v88 = vld [vmem:[#allocation2 + $0x110] sm:$0xff]
    %v89 = vld [vmem:[#allocation2 + $0x118] sm:$0xff]
    %v90 = vld [vmem:[#allocation2 + $0x120] sm:$0xff]
    %v91 = vld [vmem:[#allocation2 + $0x128] sm:$0xff]
    %v92 = vld [vmem:[#allocation2 + $0x130] sm:$0xff]
    %v93 = vld [vmem:[#allocation2 + $0x138] sm:$0xff]
    %v94 = vld [vmem:[#allocation2 + $0x140] sm:$0xff]
    %v95 = vld [vmem:[#allocation2 + $0x148] sm:$0xff]
    %v96 = vld [vmem:[#allocation2 + $0x150] sm:$0xff]
    %v97 = vld [vmem:[#allocation2 + $0x158] sm:$0xff]
    %v98 = vld [vmem:[#allocation2 + $0x160] sm:$0xff]
    %v99 = vld [vmem:[#allocation2 + $0x168] sm:$0xff]
    %v100 = vld [vmem:[#allocation2 + $0x170] sm:$0xff]
    %v101 = vld [vmem:[#allocation2 + $0x178] sm:$0xff]
    %v102 = vld [vmem:[#allocation2 + $0x180] sm:$0xff]
    %v103 = vld [vmem:[#allocation2 + $0x188] sm:$0xff]
    %v104 = vld [vmem:[#allocation2 + $0x190] sm:$0xff]
    %v105 = vld [vmem:[#allocation2 + $0x198] sm:$0xff]
    %v106 = vld [vmem:[#allocation2 + $0x1a0] sm:$0xff]
    %v107 = vld [vmem:[#allocation2 + $0x1a8] sm:$0xff]
    %v108 = vld [vmem:[#allocation2 + $0x1b0] sm:$0xff]
    %v109 = vld [vmem:[#allocation2 + $0x1b8] sm:$0xff]
    %v110 = vld [vmem:[#allocation2 + $0x1c0] sm:$0xff]
    %v111 = vld [vmem:[#allocation2 + $0x1c8] sm:$0xff]
    %v112 = vld [vmem:[#allocation2 + $0x1d0] sm:$0xff]
    %v113 = vld [vmem:[#allocation2 + $0x1d8] sm:$0xff]
    %v114 = vld [vmem:[#allocation2 + $0x1e0] sm:$0xff]
    %v115 = vld [vmem:[#allocation2 + $0x1e8] sm:$0xff]
    %v116 = vld [vmem:[#allocation2 + $0x1f0] sm:$0xff]
    %v117 = vld [vmem:[#allocation2 + $0x1f8] sm:$0xff]
    %v118 = vld [vmem:[#allocation2 + $0x200] sm:$0xff]
    %v119 = vld [vmem:[#allocation2 + $0x208] sm:$0xff]
    %v120 = vld [vmem:[#allocation2 + $0x210] sm:$0xff]
    %v121 = vld [vmem:[#allocation2 + $0x218] sm:$0xff]
    %v122 = vld [vmem:[#allocation2 + $0x220] sm:$0xff]
    %v123 = vld [vmem:[#allocation2 + $0x228] sm:$0xff]
    %v124 = vld [vmem:[#allocation2 + $0x230] sm:$0xff]
    %v125 = vld [vmem:[#allocation2 + $0x238] sm:$0xff]
    %v126 = vld [vmem:[#allocation2 + $0x240] sm:$0xff]
    %v127 = vld [vmem:[#allocation2 + $0x248] sm:$0xff]
    %v128 = vld [vmem:[#allocation2 + $0x250] sm:$0xff]
    %v129 = vld [vmem:[#allocation2 + $0x258] sm:$0xff]
    %v130 = vld [vmem:[#allocation2 + $0x260] sm:$0xff]
    %v131 = vld [vmem:[#allocation2 + $0x268] sm:$0xff]
    %v132 = vld [vmem:[#allocation2 + $0x270] sm:$0xff]
    %v133 = vld [vmem:[#allocation2 + $0x278] sm:$0xff]
    %v134 = vld [vmem:[#allocation2 + $0x280] sm:$0xff]
    %v135 = vld [vmem:[#allocation2 + $0x288] sm:$0xff]
    %v136 = vld [vmem:[#allocation2 + $0x290] sm:$0xff]
    %v137 = vld [vmem:[#allocation2 + $0x298] sm:$0xff]
    %v138 = vld [vmem:[#allocation2 + $0x2a0] sm:$0xff]
    %v139 = vld [vmem:[#allocation2 + $0x2a8] sm:$0xff]
    %v140 = vld [vmem:[#allocation2 + $0x2b0] sm:$0xff]
    %v141 = vld [vmem:[#allocation2 + $0x2b8] sm:$0xff]
    %v142 = vld [vmem:[#allocation2 + $0x2c0] sm:$0xff]
    %v143 = vld [vmem:[#allocation2 + $0x2c8] sm:$0xff]
    %v144 = vld [vmem:[#allocation2 + $0x2d0] sm:$0xff]
    %v145 = vld [vmem:[#allocation2 + $0x2d8] sm:$0xff]
    %v146 = vld [vmem:[#allocation2 + $0x2e0] sm:$0xff]
    %v147 = vld [vmem:[#allocation2 + $0x2e8] sm:$0xff]
    %v148 = vld [vmem:[#allocation2 + $0x2f0] sm:$0xff]
    %v149 = vld [vmem:[#allocation2 + $0x2f8] sm:$0xff]
    %v150 = vpack.c.bf16 %v60, %v54
    %v151 = vpack.c.bf16 %v61, %v55
    %v152 = vpack.c.bf16 %v62, %v56
    %v153 = vpack.c.bf16 %v63, %v57
    %v154 = vpack.c.bf16 %v64, %v58
    %v155 = vpack.c.bf16 %v65, %v59
    %v156 = vpack.c.bf16 %v72, %v66
    %v157 = vpack.c.bf16 %v73, %v67
    %v158 = vpack.c.bf16 %v74, %v68
    %v159 = vpack.c.bf16 %v75, %v69
    %v160 = vpack.c.bf16 %v76, %v70
    %v161 = vpack.c.bf16 %v77, %v71
    %v162 = vpack.c.bf16 %v84, %v78
    %v163 = vpack.c.bf16 %v85, %v79
    %v164 = vpack.c.bf16 %v86, %v80
    %v165 = vpack.c.bf16 %v87, %v81
    %v166 = vpack.c.bf16 %v88, %v82
    %v167 = vpack.c.bf16 %v89, %v83
    %v168 = vpack.c.bf16 %v96, %v90
    %v169 = vpack.c.bf16 %v97, %v91
    %v170 = vpack.c.bf16 %v98, %v92
    %v171 = vpack.c.bf16 %v99, %v93
    %v172 = vpack.c.bf16 %v100, %v94
    %v173 = vpack.c.bf16 %v101, %v95
    %v174 = vpack.c.bf16 %v108, %v102
    %v175 = vpack.c.bf16 %v109, %v103
    %v176 = vpack.c.bf16 %v110, %v104
    %v177 = vpack.c.bf16 %v111, %v105
    %v178 = vpack.c.bf16 %v112, %v106
    %v179 = vpack.c.bf16 %v113, %v107
    %v180 = vpack.c.bf16 %v120, %v114
    %v181 = vpack.c.bf16 %v121, %v115
    %v182 = vpack.c.bf16 %v122, %v116
    %v183 = vpack.c.bf16 %v123, %v117
    %v184 = vpack.c.bf16 %v124, %v118
    %v185 = vpack.c.bf16 %v125, %v119
    %v186 = vpack.c.bf16 %v132, %v126
    %v187 = vpack.c.bf16 %v133, %v127
    %v188 = vpack.c.bf16 %v134, %v128
    %v189 = vpack.c.bf16 %v135, %v129
    %v190 = vpack.c.bf16 %v136, %v130
    %v191 = vpack.c.bf16 %v137, %v131
    %v192 = vpack.c.bf16 %v144, %v138
    %v193 = vpack.c.bf16 %v145, %v139
    %v194 = vpack.c.bf16 %v146, %v140
    %v195 = vpack.c.bf16 %v147, %v141
    %v196 = vpack.c.bf16 %v148, %v142
    %v197 = vpack.c.bf16 %v149, %v143
    %v198 = vld [vmem:[#allocation5] sm:$0xff]
    %v199 = vld [vmem:[#allocation5 + $0x8] sm:$0xff]
    %v200 = vld [vmem:[#allocation5 + $0x10] sm:$0xff]
    %v201 = vld [vmem:[#allocation5 + $0x18] sm:$0xff]
    %v202 = vld [vmem:[#allocation5 + $0x20] sm:$0xff]
    %v203 = vld [vmem:[#allocation5 + $0x28] sm:$0xff]
    %v204 = vld [vmem:[#allocation5 + $0x30] sm:$0xff]
    %v205 = vld [vmem:[#allocation5 + $0x38] sm:$0xff]
    %v206 = vld [vmem:[#allocation5 + $0x40] sm:$0xff]
    %v207 = vld [vmem:[#allocation5 + $0x48] sm:$0xff]
    %v208 = vld [vmem:[#allocation5 + $0x50] sm:$0xff]
    %v209 = vld [vmem:[#allocation5 + $0x58] sm:$0xff]
    %v210 = vld [vmem:[#allocation5 + $0x60] sm:$0xff]
    %v211 = vld [vmem:[#allocation5 + $0x68] sm:$0xff]
    %v212 = vld [vmem:[#allocation5 + $0x70] sm:$0xff]
    %v213 = vld [vmem:[#allocation5 + $0x78] sm:$0xff]
    %v214 = vld [vmem:[#allocation5 + $0x80] sm:$0xff]
    %v215 = vld [vmem:[#allocation5 + $0x88] sm:$0xff]
    %v216 = vld [vmem:[#allocation5 + $0x90] sm:$0xff]
    %v217 = vld [vmem:[#allocation5 + $0x98] sm:$0xff]
    %v218 = vld [vmem:[#allocation5 + $0xa0] sm:$0xff]
    %v219 = vld [vmem:[#allocation5 + $0xa8] sm:$0xff]
    %v220 = vld [vmem:[#allocation5 + $0xb0] sm:$0xff]
    %v221 = vld [vmem:[#allocation5 + $0xb8] sm:$0xff]
    %v222 = vld [vmem:[#allocation5 + $0xc0] sm:$0xff]
    %v223 = vld [vmem:[#allocation5 + $0xc8] sm:$0xff]
    %v224 = vld [vmem:[#allocation5 + $0xd0] sm:$0xff]
    %v225 = vld [vmem:[#allocation5 + $0xd8] sm:$0xff]
    %v226 = vld [vmem:[#allocation5 + $0xe0] sm:$0xff]
    %v227 = vld [vmem:[#allocation5 + $0xe8] sm:$0xff]
    %v228 = vld [vmem:[#allocation5 + $0xf0] sm:$0xff]
    %v229 = vld [vmem:[#allocation5 + $0xf8] sm:$0xff]
    %v230 = vld [vmem:[#allocation5 + $0x100] sm:$0xff]
    %v231 = vld [vmem:[#allocation5 + $0x108] sm:$0xff]
    %v232 = vld [vmem:[#allocation5 + $0x110] sm:$0xff]
    %v233 = vld [vmem:[#allocation5 + $0x118] sm:$0xff]
    %v234 = vld [vmem:[#allocation5 + $0x120] sm:$0xff]
    %v235 = vld [vmem:[#allocation5 + $0x128] sm:$0xff]
    %v236 = vld [vmem:[#allocation5 + $0x130] sm:$0xff]
    %v237 = vld [vmem:[#allocation5 + $0x138] sm:$0xff]
    %v238 = vld [vmem:[#allocation5 + $0x140] sm:$0xff]
    %v239 = vld [vmem:[#allocation5 + $0x148] sm:$0xff]
    %v240 = vld [vmem:[#allocation5 + $0x150] sm:$0xff]
    %v241 = vld [vmem:[#allocation5 + $0x158] sm:$0xff]
    %v242 = vld [vmem:[#allocation5 + $0x160] sm:$0xff]
    %v243 = vld [vmem:[#allocation5 + $0x168] sm:$0xff]
    %v244 = vld [vmem:[#allocation5 + $0x170] sm:$0xff]
    %v245 = vld [vmem:[#allocation5 + $0x178] sm:$0xff]
    %v246 = vld [vmem:[#allocation5 + $0x180] sm:$0xff]
    %v247 = vld [vmem:[#allocation5 + $0x188] sm:$0xff]
    %v248 = vld [vmem:[#allocation5 + $0x190] sm:$0xff]
    %v249 = vld [vmem:[#allocation5 + $0x198] sm:$0xff]
    %v250 = vld [vmem:[#allocation5 + $0x1a0] sm:$0xff]
    %v251 = vld [vmem:[#allocation5 + $0x1a8] sm:$0xff]
    %v252 = vld [vmem:[#allocation5 + $0x1b0] sm:$0xff]
    %v253 = vld [vmem:[#allocation5 + $0x1b8] sm:$0xff]
    %v254 = vld [vmem:[#allocation5 + $0x1c0] sm:$0xff]
    %v255 = vld [vmem:[#allocation5 + $0x1c8] sm:$0xff]
    %v256 = vld [vmem:[#allocation5 + $0x1d0] sm:$0xff]
    %v257 = vld [vmem:[#allocation5 + $0x1d8] sm:$0xff]
    %v258 = vld [vmem:[#allocation5 + $0x1e0] sm:$0xff]
    %v259 = vld [vmem:[#allocation5 + $0x1e8] sm:$0xff]
    %v260 = vld [vmem:[#allocation5 + $0x1f0] sm:$0xff]
    %v261 = vld [vmem:[#allocation5 + $0x1f8] sm:$0xff]
    %v262 = vld [vmem:[#allocation5 + $0x200] sm:$0xff]
    %v263 = vld [vmem:[#allocation5 + $0x208] sm:$0xff]
    %v264 = vld [vmem:[#allocation5 + $0x210] sm:$0xff]
    %v265 = vld [vmem:[#allocation5 + $0x218] sm:$0xff]
    %v266 = vld [vmem:[#allocation5 + $0x220] sm:$0xff]
    %v267 = vld [vmem:[#allocation5 + $0x228] sm:$0xff]
    %v268 = vld [vmem:[#allocation5 + $0x230] sm:$0xff]
    %v269 = vld [vmem:[#allocation5 + $0x238] sm:$0xff]
    %v270 = vld [vmem:[#allocation5 + $0x240] sm:$0xff]
    %v271 = vld [vmem:[#allocation5 + $0x248] sm:$0xff]
    %v272 = vld [vmem:[#allocation5 + $0x250] sm:$0xff]
    %v273 = vld [vmem:[#allocation5 + $0x258] sm:$0xff]
    %v274 = vld [vmem:[#allocation5 + $0x260] sm:$0xff]
    %v275 = vld [vmem:[#allocation5 + $0x268] sm:$0xff]
    %v276 = vld [vmem:[#allocation5 + $0x270] sm:$0xff]
    %v277 = vld [vmem:[#allocation5 + $0x278] sm:$0xff]
    %v278 = vld [vmem:[#allocation5 + $0x280] sm:$0xff]
    %v279 = vld [vmem:[#allocation5 + $0x288] sm:$0xff]
    %v280 = vld [vmem:[#allocation5 + $0x290] sm:$0xff]
    %v281 = vld [vmem:[#allocation5 + $0x298] sm:$0xff]
    %v282 = vld [vmem:[#allocation5 + $0x2a0] sm:$0xff]
    %v283 = vld [vmem:[#allocation5 + $0x2a8] sm:$0xff]
    %v284 = vld [vmem:[#allocation5 + $0x2b0] sm:$0xff]
    %v285 = vld [vmem:[#allocation5 + $0x2b8] sm:$0xff]
    %v286 = vld [vmem:[#allocation5 + $0x2c0] sm:$0xff]
    %v287 = vld [vmem:[#allocation5 + $0x2c8] sm:$0xff]
    %v288 = vld [vmem:[#allocation5 + $0x2d0] sm:$0xff]
    %v289 = vld [vmem:[#allocation5 + $0x2d8] sm:$0xff]
    %v290 = vld [vmem:[#allocation5 + $0x2e0] sm:$0xff]
    %v291 = vld [vmem:[#allocation5 + $0x2e8] sm:$0xff]
    %v292 = vld [vmem:[#allocation5 + $0x2f0] sm:$0xff]
    %v293 = vld [vmem:[#allocation5 + $0x2f8] sm:$0xff]
    %v294 = vld [vmem:[#allocation7] ss:$4 sm:$0x3]
    %v296 = vlaneseq
    %v297 = vshrl.u32 %v296, 7
    %v298 = vsub.s32 0, %v297
    %v299 = vrot.slane %v294, %v298
    %v300 = vlaneseq
    %v301 = vshrl.u32 %v300, 7
    %v302 = vsub.s32 1, %v301
    %v303 = vrot.slane %v294, %v302
    %v402 = vunpack.c.l.b16 %v198
    %v403 = vunpack.c.h.b16 %v198
    %v404 = vunpack.c.l.b16 %v199
    %v405 = vunpack.c.h.b16 %v199
    %v406 = vunpack.c.l.b16 %v200
    %v407 = vunpack.c.h.b16 %v200
    %v408 = vunpack.c.l.b16 %v201
    %v409 = vunpack.c.h.b16 %v201
    %v410 = vunpack.c.l.b16 %v202
    %v411 = vunpack.c.h.b16 %v202
    %v412 = vunpack.c.l.b16 %v203
    %v413 = vunpack.c.h.b16 %v203
    %v414 = vunpack.c.l.b16 %v204
    %v415 = vunpack.c.h.b16 %v204
    %v416 = vunpack.c.l.b16 %v205
    %v417 = vunpack.c.h.b16 %v205
    %v418 = vunpack.c.l.b16 %v206
    %v419 = vunpack.c.h.b16 %v206
    %v420 = vunpack.c.l.b16 %v207
    %v421 = vunpack.c.h.b16 %v207
    %v422 = vunpack.c.l.b16 %v208
    %v423 = vunpack.c.h.b16 %v208
    %v424 = vunpack.c.l.b16 %v209
    %v425 = vunpack.c.h.b16 %v209
    %v426 = vunpack.c.l.b16 %v210
    %v427 = vunpack.c.h.b16 %v210
    %v428 = vunpack.c.l.b16 %v211
    %v429 = vunpack.c.h.b16 %v211
    %v430 = vunpack.c.l.b16 %v212
    %v431 = vunpack.c.h.b16 %v212
    %v432 = vunpack.c.l.b16 %v213
    %v433 = vunpack.c.h.b16 %v213
    %v434 = vunpack.c.l.b16 %v214
    %v435 = vunpack.c.h.b16 %v214
    %v436 = vunpack.c.l.b16 %v215
    %v437 = vunpack.c.h.b16 %v215
    %v438 = vunpack.c.l.b16 %v216
    %v439 = vunpack.c.h.b16 %v216
    %v440 = vunpack.c.l.b16 %v217
    %v441 = vunpack.c.h.b16 %v217
    %v442 = vunpack.c.l.b16 %v218
    %v443 = vunpack.c.h.b16 %v218
    %v444 = vunpack.c.l.b16 %v219
    %v445 = vunpack.c.h.b16 %v219
    %v446 = vunpack.c.l.b16 %v220
    %v447 = vunpack.c.h.b16 %v220
    %v448 = vunpack.c.l.b16 %v221
    %v449 = vunpack.c.h.b16 %v221
    %v450 = vunpack.c.l.b16 %v222
    %v451 = vunpack.c.h.b16 %v222
    %v452 = vunpack.c.l.b16 %v223
    %v453 = vunpack.c.h.b16 %v223
    %v454 = vunpack.c.l.b16 %v224
    %v455 = vunpack.c.h.b16 %v224
    %v456 = vunpack.c.l.b16 %v225
    %v457 = vunpack.c.h.b16 %v225
    %v458 = vunpack.c.l.b16 %v226
    %v459 = vunpack.c.h.b16 %v226
    %v460 = vunpack.c.l.b16 %v227
    %v461 = vunpack.c.h.b16 %v227
    %v462 = vunpack.c.l.b16 %v228
    %v463 = vunpack.c.h.b16 %v228
    %v464 = vunpack.c.l.b16 %v229
    %v465 = vunpack.c.h.b16 %v229
    %v466 = vunpack.c.l.b16 %v230
    %v467 = vunpack.c.h.b16 %v230
    %v468 = vunpack.c.l.b16 %v231
    %v469 = vunpack.c.h.b16 %v231
    %v470 = vunpack.c.l.b16 %v232
    %v471 = vunpack.c.h.b16 %v232
    %v472 = vunpack.c.l.b16 %v233
    %v473 = vunpack.c.h.b16 %v233
    %v474 = vunpack.c.l.b16 %v234
    %v475 = vunpack.c.h.b16 %v234
    %v476 = vunpack.c.l.b16 %v235
    %v477 = vunpack.c.h.b16 %v235
    %v478 = vunpack.c.l.b16 %v236
    %v479 = vunpack.c.h.b16 %v236
    %v480 = vunpack.c.l.b16 %v237
    %v481 = vunpack.c.h.b16 %v237
    %v482 = vunpack.c.l.b16 %v238
    %v483 = vunpack.c.h.b16 %v238
    %v484 = vunpack.c.l.b16 %v239
    %v485 = vunpack.c.h.b16 %v239
    %v486 = vunpack.c.l.b16 %v240
    %v487 = vunpack.c.h.b16 %v240
    %v488 = vunpack.c.l.b16 %v241
    %v489 = vunpack.c.h.b16 %v241
    %v490 = vunpack.c.l.b16 %v242
    %v491 = vunpack.c.h.b16 %v242
    %v492 = vunpack.c.l.b16 %v243
    %v493 = vunpack.c.h.b16 %v243
    %v494 = vunpack.c.l.b16 %v244
    %v495 = vunpack.c.h.b16 %v244
    %v496 = vunpack.c.l.b16 %v245
    %v497 = vunpack.c.h.b16 %v245
    %v498 = vunpack.c.l.b16 %v246
    %v499 = vunpack.c.h.b16 %v246
    %v500 = vunpack.c.l.b16 %v247
    %v501 = vunpack.c.h.b16 %v247
    %v502 = vunpack.c.l.b16 %v248
    %v503 = vunpack.c.h.b16 %v248
    %v504 = vunpack.c.l.b16 %v249
    %v505 = vunpack.c.h.b16 %v249
    %v506 = vunpack.c.l.b16 %v250
    %v507 = vunpack.c.h.b16 %v250
    %v508 = vunpack.c.l.b16 %v251
    %v509 = vunpack.c.h.b16 %v251
    %v510 = vunpack.c.l.b16 %v252
    %v511 = vunpack.c.h.b16 %v252
    %v512 = vunpack.c.l.b16 %v253
    %v513 = vunpack.c.h.b16 %v253
    %v514 = vunpack.c.l.b16 %v254
    %v515 = vunpack.c.h.b16 %v254
    %v516 = vunpack.c.l.b16 %v255
    %v517 = vunpack.c.h.b16 %v255
    %v518 = vunpack.c.l.b16 %v256
    %v519 = vunpack.c.h.b16 %v256
    %v520 = vunpack.c.l.b16 %v257
    %v521 = vunpack.c.h.b16 %v257
    %v522 = vunpack.c.l.b16 %v258
    %v523 = vunpack.c.h.b16 %v258
    %v524 = vunpack.c.l.b16 %v259
    %v525 = vunpack.c.h.b16 %v259
    %v526 = vunpack.c.l.b16 %v260
    %v527 = vunpack.c.h.b16 %v260
    %v528 = vunpack.c.l.b16 %v261
    %v529 = vunpack.c.h.b16 %v261
    %v530 = vunpack.c.l.b16 %v262
    %v531 = vunpack.c.h.b16 %v262
    %v532 = vunpack.c.l.b16 %v263
    %v533 = vunpack.c.h.b16 %v263
    %v534 = vunpack.c.l.b16 %v264
    %v535 = vunpack.c.h.b16 %v264
    %v536 = vunpack.c.l.b16 %v265
    %v537 = vunpack.c.h.b16 %v265
    %v538 = vunpack.c.l.b16 %v266
    %v539 = vunpack.c.h.b16 %v266
    %v540 = vunpack.c.l.b16 %v267
    %v541 = vunpack.c.h.b16 %v267
    %v542 = vunpack.c.l.b16 %v268
    %v543 = vunpack.c.h.b16 %v268
    %v544 = vunpack.c.l.b16 %v269
    %v545 = vunpack.c.h.b16 %v269
    %v546 = vunpack.c.l.b16 %v270
    %v547 = vunpack.c.h.b16 %v270
    %v548 = vunpack.c.l.b16 %v271
    %v549 = vunpack.c.h.b16 %v271
    %v550 = vunpack.c.l.b16 %v272
    %v551 = vunpack.c.h.b16 %v272
    %v552 = vunpack.c.l.b16 %v273
    %v553 = vunpack.c.h.b16 %v273
    %v554 = vunpack.c.l.b16 %v274
    %v555 = vunpack.c.h.b16 %v274
    %v556 = vunpack.c.l.b16 %v275
    %v557 = vunpack.c.h.b16 %v275
    %v558 = vunpack.c.l.b16 %v276
    %v559 = vunpack.c.h.b16 %v276
    %v560 = vunpack.c.l.b16 %v277
    %v561 = vunpack.c.h.b16 %v277
    %v562 = vunpack.c.l.b16 %v278
    %v563 = vunpack.c.h.b16 %v278
    %v564 = vunpack.c.l.b16 %v279
    %v565 = vunpack.c.h.b16 %v279
    %v566 = vunpack.c.l.b16 %v280
    %v567 = vunpack.c.h.b16 %v280
    %v568 = vunpack.c.l.b16 %v281
    %v569 = vunpack.c.h.b16 %v281
    %v570 = vunpack.c.l.b16 %v282
    %v571 = vunpack.c.h.b16 %v282
    %v572 = vunpack.c.l.b16 %v283
    %v573 = vunpack.c.h.b16 %v283
    %v574 = vunpack.c.l.b16 %v284
    %v575 = vunpack.c.h.b16 %v284
    %v576 = vunpack.c.l.b16 %v285
    %v577 = vunpack.c.h.b16 %v285
    %v578 = vunpack.c.l.b16 %v286
    %v579 = vunpack.c.h.b16 %v286
    %v580 = vunpack.c.l.b16 %v287
    %v581 = vunpack.c.h.b16 %v287
    %v582 = vunpack.c.l.b16 %v288
    %v583 = vunpack.c.h.b16 %v288
    %v584 = vunpack.c.l.b16 %v289
    %v585 = vunpack.c.h.b16 %v289
    %v586 = vunpack.c.l.b16 %v290
    %v587 = vunpack.c.h.b16 %v290
    %v588 = vunpack.c.l.b16 %v291
    %v589 = vunpack.c.h.b16 %v291
    %v590 = vunpack.c.l.b16 %v292
    %v591 = vunpack.c.h.b16 %v292
    %v592 = vunpack.c.l.b16 %v293
    %v593 = vunpack.c.h.b16 %v293
    %v594 = vpack.c.b16 %v404, %v402
    %v595 = vpack.c.b16 %v405, %v403
    %v596 = vpack.c.b16 %v408, %v406
    %v597 = vpack.c.b16 %v409, %v407
    %v598 = vpack.c.b16 %v412, %v410
    %v599 = vpack.c.b16 %v413, %v411
    %v600 = vpack.c.b16 %v416, %v414
    %v601 = vpack.c.b16 %v417, %v415
    %v602 = vpack.c.b16 %v420, %v418
    %v603 = vpack.c.b16 %v421, %v419
    %v604 = vpack.c.b16 %v424, %v422
    %v605 = vpack.c.b16 %v425, %v423
    %v606 = vpack.c.b16 %v428, %v426
    %v607 = vpack.c.b16 %v429, %v427
    %v608 = vpack.c.b16 %v432, %v430
    %v609 = vpack.c.b16 %v433, %v431
    %v610 = vpack.c.b16 %v436, %v434
    %v611 = vpack.c.b16 %v437, %v435
    %v612 = vpack.c.b16 %v440, %v438
    %v613 = vpack.c.b16 %v441, %v439
    %v614 = vpack.c.b16 %v444, %v442
    %v615 = vpack.c.b16 %v445, %v443
    %v616 = vpack.c.b16 %v448, %v446
    %v617 = vpack.c.b16 %v449, %v447
    %v618 = vpack.c.b16 %v452, %v450
    %v619 = vpack.c.b16 %v453, %v451
    %v620 = vpack.c.b16 %v456, %v454
    %v621 = vpack.c.b16 %v457, %v455
    %v622 = vpack.c.b16 %v460, %v458
    %v623 = vpack.c.b16 %v461, %v459
    %v624 = vpack.c.b16 %v464, %v462
    %v625 = vpack.c.b16 %v465, %v463
    %v626 = vpack.c.b16 %v468, %v466
    %v627 = vpack.c.b16 %v469, %v467
    %v628 = vpack.c.b16 %v472, %v470
    %v629 = vpack.c.b16 %v473, %v471
    %v630 = vpack.c.b16 %v476, %v474
    %v631 = vpack.c.b16 %v477, %v475
    %v632 = vpack.c.b16 %v480, %v478
    %v633 = vpack.c.b16 %v481, %v479
    %v634 = vpack.c.b16 %v484, %v482
    %v635 = vpack.c.b16 %v485, %v483
    %v636 = vpack.c.b16 %v488, %v486
    %v637 = vpack.c.b16 %v489, %v487
    %v638 = vpack.c.b16 %v492, %v490
    %v639 = vpack.c.b16 %v493, %v491
    %v640 = vpack.c.b16 %v496, %v494
    %v641 = vpack.c.b16 %v497, %v495
    %v642 = vpack.c.b16 %v500, %v498
    %v643 = vpack.c.b16 %v501, %v499
    %v644 = vpack.c.b16 %v504, %v502
    %v645 = vpack.c.b16 %v505, %v503
    %v646 = vpack.c.b16 %v508, %v506
    %v647 = vpack.c.b16 %v509, %v507
    %v648 = vpack.c.b16 %v512, %v510
    %v649 = vpack.c.b16 %v513, %v511
    %v650 = vpack.c.b16 %v516, %v514
    %v651 = vpack.c.b16 %v517, %v515
    %v652 = vpack.c.b16 %v520, %v518
    %v653 = vpack.c.b16 %v521, %v519
    %v654 = vpack.c.b16 %v524, %v522
    %v655 = vpack.c.b16 %v525, %v523
    %v656 = vpack.c.b16 %v528, %v526
    %v657 = vpack.c.b16 %v529, %v527
    %v658 = vpack.c.b16 %v532, %v530
    %v659 = vpack.c.b16 %v533, %v531
    %v660 = vpack.c.b16 %v536, %v534
    %v661 = vpack.c.b16 %v537, %v535
    %v662 = vpack.c.b16 %v540, %v538
    %v663 = vpack.c.b16 %v541, %v539
    %v664 = vpack.c.b16 %v544, %v542
    %v665 = vpack.c.b16 %v545, %v543
    %v666 = vpack.c.b16 %v548, %v546
    %v667 = vpack.c.b16 %v549, %v547
    %v668 = vpack.c.b16 %v552, %v550
    %v669 = vpack.c.b16 %v553, %v551
    %v670 = vpack.c.b16 %v556, %v554
    %v671 = vpack.c.b16 %v557, %v555
    %v672 = vpack.c.b16 %v560, %v558
    %v673 = vpack.c.b16 %v561, %v559
    %v674 = vpack.c.b16 %v564, %v562
    %v675 = vpack.c.b16 %v565, %v563
    %v676 = vpack.c.b16 %v568, %v566
    %v677 = vpack.c.b16 %v569, %v567
    %v678 = vpack.c.b16 %v572, %v570
    %v679 = vpack.c.b16 %v573, %v571
    %v680 = vpack.c.b16 %v576, %v574
    %v681 = vpack.c.b16 %v577, %v575
    %v682 = vpack.c.b16 %v580, %v578
    %v683 = vpack.c.b16 %v581, %v579
    %v684 = vpack.c.b16 %v584, %v582
    %v685 = vpack.c.b16 %v585, %v583
    %v686 = vpack.c.b16 %v588, %v586
    %v687 = vpack.c.b16 %v589, %v587
    %v688 = vpack.c.b16 %v592, %v590
    %v689 = vpack.c.b16 %v593, %v591
    %786 = vmatprep.subr.bf16.mxu0 %v595
    %787 = vmatpush1.bf16.msra.mxu0 %v594
    %788 = vmatprep.subr.bf16.mxu0 %v597
    %789 = vmatpush1.bf16.msra.mxu0 %v596
    %790 = vmatprep.subr.bf16.mxu0 %v599
    %791 = vmatpush1.bf16.msra.mxu0 %v598
    %792 = vmatprep.subr.bf16.mxu0 %v601
    %793 = vmatpush1.bf16.msra.mxu0 %v600
    %794 = vmatprep.subr.bf16.mxu0 %v603
    %795 = vmatpush1.bf16.msra.mxu0 %v602
    %796 = vmatprep.subr.bf16.mxu0 %v605
    %797 = vmatpush1.bf16.msra.mxu0 %v604
    %798 = vmatprep.subr.bf16.mxu0 %v607
    %799 = vmatpush1.bf16.msra.mxu0 %v606
    %800 = vmatprep.subr.bf16.mxu0 %v609
    %801 = vmatpush1.bf16.msra.mxu0 %v608
    %802 = vmatprep.subr.bf16.mxu0 %v611
    %803 = vmatpush1.bf16.msra.mxu0 %v610
    %804 = vmatprep.subr.bf16.mxu0 %v613
    %805 = vmatpush1.bf16.msra.mxu0 %v612
    %806 = vmatprep.subr.bf16.mxu0 %v615
    %807 = vmatpush1.bf16.msra.mxu0 %v614
    %808 = vmatprep.subr.bf16.mxu0 %v617
    %809 = vmatpush1.bf16.msra.mxu0 %v616
    %810 = vmatprep.subr.bf16.mxu0 %v619
    %811 = vmatpush1.bf16.msra.mxu0 %v618
    %812 = vmatprep.subr.bf16.mxu0 %v621
    %813 = vmatpush1.bf16.msra.mxu0 %v620
    %814 = vmatprep.subr.bf16.mxu0 %v623
    %815 = vmatpush1.bf16.msra.mxu0 %v622
    %816 = vmatprep.subr.bf16.mxu0 %v625
    %817 = vmatpush1.bf16.msra.mxu0 %v624
    %818 = vmatprep.mubr.bf16.mxu0 %v151
    %819 = vmatmul.mubr.bf16.gmra.mrb[0].mxu0 %v150
    %v820 = vpop.f32.mrb[0].mxu0
    %v821 = vadd.f32 %v299, %v820
    %v822 = vpop.f32.mrb[0].mxu0
    %v823 = vadd.f32 %v303, %v822
    %v824 = vpop.f32.mrb[0].mxu0
    %v825 = vadd.f32 %v299, %v824
    %v826 = vpop.f32.mrb[0].mxu0
    %v827 = vadd.f32 %v303, %v826
    %828 = vmatprep.mubr.bf16.mxu0 %v157
    %829 = vmatmul.mubr.bf16.gmra.mrb[0].mxu0 %v156
    %v830 = vpop.f32.mrb[0].mxu0
    %v831 = vadd.f32 %v299, %v830
    %v832 = vpop.f32.mrb[0].mxu0
    %v833 = vadd.f32 %v303, %v832
    %v834 = vpop.f32.mrb[0].mxu0
    %v835 = vadd.f32 %v299, %v834
    %v836 = vpop.f32.mrb[0].mxu0
    %v837 = vadd.f32 %v303, %v836
    %838 = vmatprep.mubr.bf16.mxu0 %v163
    %839 = vmatmul.mubr.bf16.gmra.mrb[0].mxu0 %v162
    %v840 = vpop.f32.mrb[0].mxu0
    %v841 = vadd.f32 %v299, %v840
    %v842 = vpop.f32.mrb[0].mxu0
    %v843 = vadd.f32 %v303, %v842
    %v844 = vpop.f32.mrb[0].mxu0
    %v845 = vadd.f32 %v299, %v844
    %v846 = vpop.f32.mrb[0].mxu0
    %v847 = vadd.f32 %v303, %v846
    %848 = vmatprep.mubr.bf16.mxu0 %v169
    %849 = vmatmul.mubr.bf16.gmra.mrb[0].mxu0 %v168
    %v850 = vpop.f32.mrb[0].mxu0
    %v851 = vadd.f32 %v299, %v850
    %v852 = vpop.f32.mrb[0].mxu0
    %v853 = vadd.f32 %v303, %v852
    %v854 = vpop.f32.mrb[0].mxu0
    %v855 = vadd.f32 %v299, %v854
    %v856 = vpop.f32.mrb[0].mxu0
    %v857 = vadd.f32 %v303, %v856
    %858 = vmatprep.mubr.bf16.mxu0 %v175
    %859 = vmatmul.mubr.bf16.gmra.mrb[0].mxu0 %v174
    %v860 = vpop.f32.mrb[0].mxu0
    %v861 = vadd.f32 %v299, %v860
    %v862 = vpop.f32.mrb[0].mxu0
    %v863 = vadd.f32 %v303, %v862
    %v864 = vpop.f32.mrb[0].mxu0
    %v865 = vadd.f32 %v299, %v864
    %v866 = vpop.f32.mrb[0].mxu0
    %v867 = vadd.f32 %v303, %v866
    %868 = vmatprep.mubr.bf16.mxu0 %v181
    %869 = vmatmul.mubr.bf16.gmra.mrb[0].mxu0 %v180
    %v870 = vpop.f32.mrb[0].mxu0
    %v871 = vadd.f32 %v299, %v870
    %v872 = vpop.f32.mrb[0].mxu0
    %v873 = vadd.f32 %v303, %v872
    %v874 = vpop.f32.mrb[0].mxu0
    %v875 = vadd.f32 %v299, %v874
    %v876 = vpop.f32.mrb[0].mxu0
    %v877 = vadd.f32 %v303, %v876
    %878 = vmatprep.mubr.bf16.mxu0 %v187
    %879 = vmatmul.mubr.bf16.gmra.mrb[0].mxu0 %v186
    %v880 = vpop.f32.mrb[0].mxu0
    %v881 = vadd.f32 %v299, %v880
    %v882 = vpop.f32.mrb[0].mxu0
    %v883 = vadd.f32 %v303, %v882
    %v884 = vpop.f32.mrb[0].mxu0
    %v885 = vadd.f32 %v299, %v884
    %v886 = vpop.f32.mrb[0].mxu0
    %v887 = vadd.f32 %v303, %v886
    %888 = vmatprep.mubr.bf16.mxu0 %v193
    %889 = vmatmul.mubr.bf16.gmra.mrb[0].mxu0 %v192
    %v890 = vpop.f32.mrb[0].mxu0
    %v891 = vadd.f32 %v299, %v890
    %v892 = vpop.f32.mrb[0].mxu0
    %v893 = vadd.f32 %v303, %v892
    %v894 = vpop.f32.mrb[0].mxu0
    %v895 = vadd.f32 %v299, %v894
    %v896 = vpop.f32.mrb[0].mxu0
    %v897 = vadd.f32 %v303, %v896
    %898 = vdwg.mxu0
    %899 = vmatprep.subr.bf16.mxu0 %v627
    %900 = vmatpush1.bf16.msra.mxu0 %v626
    %901 = vmatprep.subr.bf16.mxu0 %v629
    %902 = vmatpush1.bf16.msra.mxu0 %v628
    %903 = vmatprep.subr.bf16.mxu0 %v631
    %904 = vmatpush1.bf16.msra.mxu0 %v630
    %905 = vmatprep.subr.bf16.mxu0 %v633
    %906 = vmatpush1.bf16.msra.mxu0 %v632
    %907 = vmatprep.subr.bf16.mxu0 %v635
    %908 = vmatpush1.bf16.msra.mxu0 %v634
    %909 = vmatprep.subr.bf16.mxu0 %v637
    %910 = vmatpush1.bf16.msra.mxu0 %v636
    %911 = vmatprep.subr.bf16.mxu0 %v639
    %912 = vmatpush1.bf16.msra.mxu0 %v638
    %913 = vmatprep.subr.bf16.mxu0 %v641
    %914 = vmatpush1.bf16.msra.mxu0 %v640
    %915 = vmatprep.subr.bf16.mxu0 %v643
    %916 = vmatpush1.bf16.msra.mxu0 %v642
    %917 = vmatprep.subr.bf16.mxu0 %v645
    %918 = vmatpush1.bf16.msra.mxu0 %v644
    %919 = vmatprep.subr.bf16.mxu0 %v647
    %920 = vmatpush1.bf16.msra.mxu0 %v646
    %921 = vmatprep.subr.bf16.mxu0 %v649
    %922 = vmatpush1.bf16.msra.mxu0 %v648
    %923 = vmatprep.subr.bf16.mxu0 %v651
    %924 = vmatpush1.bf16.msra.mxu0 %v650
    %925 = vmatprep.subr.bf16.mxu0 %v653
    %926 = vmatpush1.bf16.msra.mxu0 %v652
    %927 = vmatprep.subr.bf16.mxu0 %v655
    %928 = vmatpush1.bf16.msra.mxu0 %v654
    %929 = vmatprep.subr.bf16.mxu0 %v657
    %930 = vmatpush1.bf16.msra.mxu0 %v656
    %931 = vmatprep.mubr.bf16.mxu0 %v153
    %932 = vmatmul.mubr.bf16.gmra.mrb[0].mxu0 %v152
    %v933 = vpop.f32.mrb[0].mxu0
    %v934 = vadd.f32 %v821, %v933
    %v935 = vpop.f32.mrb[0].mxu0
    %v936 = vadd.f32 %v823, %v935
    %v937 = vpop.f32.mrb[0].mxu0
    %v938 = vadd.f32 %v825, %v937
    %v939 = vpop.f32.mrb[0].mxu0
    %v940 = vadd.f32 %v827, %v939
    %941 = vmatprep.mubr.bf16.mxu0 %v159
    %942 = vmatmul.mubr.bf16.gmra.mrb[0].mxu0 %v158
    %v943 = vpop.f32.mrb[0].mxu0
    %v944 = vadd.f32 %v831, %v943
    %v945 = vpop.f32.mrb[0].mxu0
    %v946 = vadd.f32 %v833, %v945
    %v947 = vpop.f32.mrb[0].mxu0
    %v948 = vadd.f32 %v835, %v947
    %v949 = vpop.f32.mrb[0].mxu0
    %v950 = vadd.f32 %v837, %v949
    %951 = vmatprep.mubr.bf16.mxu0 %v165
    %952 = vmatmul.mubr.bf16.gmra.mrb[0].mxu0 %v164
    %v953 = vpop.f32.mrb[0].mxu0
    %v954 = vadd.f32 %v841, %v953
    %v955 = vpop.f32.mrb[0].mxu0
    %v956 = vadd.f32 %v843, %v955
    %v957 = vpop.f32.mrb[0].mxu0
    %v958 = vadd.f32 %v845, %v957
    %v959 = vpop.f32.mrb[0].mxu0
    %v960 = vadd.f32 %v847, %v959
    %961 = vmatprep.mubr.bf16.mxu0 %v171
    %962 = vmatmul.mubr.bf16.gmra.mrb[0].mxu0 %v170
    %v963 = vpop.f32.mrb[0].mxu0
    %v964 = vadd.f32 %v851, %v963
    %v965 = vpop.f32.mrb[0].mxu0
    %v966 = vadd.f32 %v853, %v965
    %v967 = vpop.f32.mrb[0].mxu0
    %v968 = vadd.f32 %v855, %v967
    %v969 = vpop.f32.mrb[0].mxu0
    %v970 = vadd.f32 %v857, %v969
    %971 = vmatprep.mubr.bf16.mxu0 %v177
    %972 = vmatmul.mubr.bf16.gmra.mrb[0].mxu0 %v176
    %v973 = vpop.f32.mrb[0].mxu0
    %v974 = vadd.f32 %v861, %v973
    %v975 = vpop.f32.mrb[0].mxu0
    %v976 = vadd.f32 %v863, %v975
    %v977 = vpop.f32.mrb[0].mxu0
    %v978 = vadd.f32 %v865, %v977
    %v979 = vpop.f32.mrb[0].mxu0
    %v980 = vadd.f32 %v867, %v979
    %981 = vmatprep.mubr.bf16.mxu0 %v183
    %982 = vmatmul.mubr.bf16.gmra.mrb[0].mxu0 %v182
    %v983 = vpop.f32.mrb[0].mxu0
    %v984 = vadd.f32 %v871, %v983
    %v985 = vpop.f32.mrb[0].mxu0
    %v986 = vadd.f32 %v873, %v985
    %v987 = vpop.f32.mrb[0].mxu0
    %v988 = vadd.f32 %v875, %v987
    %v989 = vpop.f32.mrb[0].mxu0
    %v990 = vadd.f32 %v877, %v989
    %991 = vmatprep.mubr.bf16.mxu0 %v189
    %992 = vmatmul.mubr.bf16.gmra.mrb[0].mxu0 %v188
    %v993 = vpop.f32.mrb[0].mxu0
    %v994 = vadd.f32 %v881, %v993
    %v995 = vpop.f32.mrb[0].mxu0
    %v996 = vadd.f32 %v883, %v995
    %v997 = vpop.f32.mrb[0].mxu0
    %v998 = vadd.f32 %v885, %v997
    %v999 = vpop.f32.mrb[0].mxu0
    %v1000 = vadd.f32 %v887, %v999
    %1001 = vmatprep.mubr.bf16.mxu0 %v195
    %1002 = vmatmul.mubr.bf16.gmra.mrb[0].mxu0 %v194
    %v1003 = vpop.f32.mrb[0].mxu0
    %v1004 = vadd.f32 %v891, %v1003
    %v1005 = vpop.f32.mrb[0].mxu0
    %v1006 = vadd.f32 %v893, %v1005
    %v1007 = vpop.f32.mrb[0].mxu0
    %v1008 = vadd.f32 %v895, %v1007
    %v1009 = vpop.f32.mrb[0].mxu0
    %v1010 = vadd.f32 %v897, %v1009
    %1011 = vdwg.mxu0
    %1012 = vmatprep.subr.bf16.mxu0 %v659
    %1013 = vmatpush1.bf16.msra.mxu0 %v658
    %1014 = vmatprep.subr.bf16.mxu0 %v661
    %1015 = vmatpush1.bf16.msra.mxu0 %v660
    %1016 = vmatprep.subr.bf16.mxu0 %v663
    %1017 = vmatpush1.bf16.msra.mxu0 %v662
    %1018 = vmatprep.subr.bf16.mxu0 %v665
    %1019 = vmatpush1.bf16.msra.mxu0 %v664
    %1020 = vmatprep.subr.bf16.mxu0 %v667
    %1021 = vmatpush1.bf16.msra.mxu0 %v666
    %1022 = vmatprep.subr.bf16.mxu0 %v669
    %1023 = vmatpush1.bf16.msra.mxu0 %v668
    %1024 = vmatprep.subr.bf16.mxu0 %v671
    %1025 = vmatpush1.bf16.msra.mxu0 %v670
    %1026 = vmatprep.subr.bf16.mxu0 %v673
    %1027 = vmatpush1.bf16.msra.mxu0 %v672
    %1028 = vmatprep.subr.bf16.mxu0 %v675
    %1029 = vmatpush1.bf16.msra.mxu0 %v674
    %1030 = vmatprep.subr.bf16.mxu0 %v677
    %1031 = vmatpush1.bf16.msra.mxu0 %v676
    %1032 = vmatprep.subr.bf16.mxu0 %v679
    %1033 = vmatpush1.bf16.msra.mxu0 %v678
    %1034 = vmatprep.subr.bf16.mxu0 %v681
    %1035 = vmatpush1.bf16.msra.mxu0 %v680
    %1036 = vmatprep.subr.bf16.mxu0 %v683
    %1037 = vmatpush1.bf16.msra.mxu0 %v682
    %1038 = vmatprep.subr.bf16.mxu0 %v685
    %1039 = vmatpush1.bf16.msra.mxu0 %v684
    %1040 = vmatprep.subr.bf16.mxu0 %v687
    %1041 = vmatpush1.bf16.msra.mxu0 %v686
    %1042 = vmatprep.subr.bf16.mxu0 %v689
    %1043 = vmatpush1.bf16.msra.mxu0 %v688
    %1044 = vmatprep.mubr.bf16.mxu0 %v155
    %1045 = vmatmul.mubr.bf16.gmra.mrb[0].mxu0 %v154
    %v1046 = vpop.f32.mrb[0].mxu0
    %v1047 = vadd.f32 %v934, %v1046
    %v1048 = vpop.f32.mrb[0].mxu0
    %v1049 = vadd.f32 %v936, %v1048
    %v1050 = vpop.f32.mrb[0].mxu0
    %v1051 = vadd.f32 %v938, %v1050
    %v1052 = vpop.f32.mrb[0].mxu0
    %v1053 = vadd.f32 %v940, %v1052
    %1054 = vmatprep.mubr.bf16.mxu0 %v161
    %1055 = vmatmul.mubr.bf16.gmra.mrb[0].mxu0 %v160
    %v1056 = vpop.f32.mrb[0].mxu0
    %v1057 = vadd.f32 %v944, %v1056
    %v1058 = vpop.f32.mrb[0].mxu0
    %v1059 = vadd.f32 %v946, %v1058
    %v1060 = vpop.f32.mrb[0].mxu0
    %v1061 = vadd.f32 %v948, %v1060
    %v1062 = vpop.f32.mrb[0].mxu0
    %v1063 = vadd.f32 %v950, %v1062
    %1064 = vmatprep.mubr.bf16.mxu0 %v167
    %1065 = vmatmul.mubr.bf16.gmra.mrb[0].mxu0 %v166
    %v1066 = vpop.f32.mrb[0].mxu0
    %v1067 = vadd.f32 %v954, %v1066
    %v1068 = vpop.f32.mrb[0].mxu0
    %v1069 = vadd.f32 %v956, %v1068
    %v1070 = vpop.f32.mrb[0].mxu0
    %v1071 = vadd.f32 %v958, %v1070
    %v1072 = vpop.f32.mrb[0].mxu0
    %v1073 = vadd.f32 %v960, %v1072
    %1074 = vmatprep.mubr.bf16.mxu0 %v173
    %1075 = vmatmul.mubr.bf16.gmra.mrb[0].mxu0 %v172
    %v1076 = vpop.f32.mrb[0].mxu0
    %v1077 = vadd.f32 %v964, %v1076
    %v1078 = vpop.f32.mrb[0].mxu0
    %v1079 = vadd.f32 %v966, %v1078
    %v1080 = vpop.f32.mrb[0].mxu0
    %v1081 = vadd.f32 %v968, %v1080
    %v1082 = vpop.f32.mrb[0].mxu0
    %v1083 = vadd.f32 %v970, %v1082
    %1084 = vmatprep.mubr.bf16.mxu0 %v179
    %1085 = vmatmul.mubr.bf16.gmra.mrb[0].mxu0 %v178
    %v1086 = vpop.f32.mrb[0].mxu0
    %v1087 = vadd.f32 %v974, %v1086
    %v1088 = vpop.f32.mrb[0].mxu0
    %v1089 = vadd.f32 %v976, %v1088
    %v1090 = vpop.f32.mrb[0].mxu0
    %v1091 = vadd.f32 %v978, %v1090
    %v1092 = vpop.f32.mrb[0].mxu0
    %v1093 = vadd.f32 %v980, %v1092
    %1094 = vmatprep.mubr.bf16.mxu0 %v185
    %1095 = vmatmul.mubr.bf16.gmra.mrb[0].mxu0 %v184
    %v1096 = vpop.f32.mrb[0].mxu0
    %v1097 = vadd.f32 %v984, %v1096
    %v1098 = vpop.f32.mrb[0].mxu0
    %v1099 = vadd.f32 %v986, %v1098
    %v1100 = vpop.f32.mrb[0].mxu0
    %v1101 = vadd.f32 %v988, %v1100
    %v1102 = vpop.f32.mrb[0].mxu0
    %v1103 = vadd.f32 %v990, %v1102
    %1104 = vmatprep.mubr.bf16.mxu0 %v191
    %1105 = vmatmul.mubr.bf16.gmra.mrb[0].mxu0 %v190
    %v1106 = vpop.f32.mrb[0].mxu0
    %v1107 = vadd.f32 %v994, %v1106
    %v1108 = vpop.f32.mrb[0].mxu0
    %v1109 = vadd.f32 %v996, %v1108
    %v1110 = vpop.f32.mrb[0].mxu0
    %v1111 = vadd.f32 %v998, %v1110
    %v1112 = vpop.f32.mrb[0].mxu0
    %v1113 = vadd.f32 %v1000, %v1112
    %1114 = vmatprep.mubr.bf16.mxu0 %v197
    %1115 = vmatmul.mubr.bf16.gmra.mrb[0].mxu0 %v196
    %v1116 = vpop.f32.mrb[0].mxu0
    %v1117 = vadd.f32 %v1004, %v1116
    %v1118 = vpop.f32.mrb[0].mxu0
    %v1119 = vadd.f32 %v1006, %v1118
    %v1120 = vpop.f32.mrb[0].mxu0
    %v1121 = vadd.f32 %v1008, %v1120
    %v1122 = vpop.f32.mrb[0].mxu0
    %v1123 = vadd.f32 %v1010, %v1122
    %1124 = vdwg.mxu0
    %v1125 = vadd.f32 %v1047, %v1049
    %1126 = vadd.xlane.f32.xlu0 %v1125
    %v1127 = vpop.xlane.xlu0 %1126
    %v1128 = vadd.f32 %v1051, %v1053
    %1129 = vadd.xlane.f32.xlu0 %v1128
    %v1130 = vpop.xlane.xlu0 %1129
    %v1131 = vadd.f32 %v1057, %v1059
    %1132 = vadd.xlane.f32.xlu0 %v1131
    %v1133 = vpop.xlane.xlu0 %1132
    %v1134 = vadd.f32 %v1061, %v1063
    %1135 = vadd.xlane.f32.xlu0 %v1134
    %v1136 = vpop.xlane.xlu0 %1135
    %v1137 = vadd.f32 %v1067, %v1069
    %1138 = vadd.xlane.f32.xlu0 %v1137
    %v1139 = vpop.xlane.xlu0 %1138
    %v1140 = vadd.f32 %v1071, %v1073
    %1141 = vadd.xlane.f32.xlu0 %v1140
    %v1142 = vpop.xlane.xlu0 %1141
    %v1143 = vadd.f32 %v1077, %v1079
    %1144 = vadd.xlane.f32.xlu0 %v1143
    %v1145 = vpop.xlane.xlu0 %1144
    %v1146 = vadd.f32 %v1081, %v1083
    %1147 = vadd.xlane.f32.xlu0 %v1146
    %v1148 = vpop.xlane.xlu0 %1147
    %v1149 = vadd.f32 %v1087, %v1089
    %1150 = vadd.xlane.f32.xlu0 %v1149
    %v1151 = vpop.xlane.xlu0 %1150
    %v1152 = vadd.f32 %v1091, %v1093
    %1153 = vadd.xlane.f32.xlu0 %v1152
    %v1154 = vpop.xlane.xlu0 %1153
    %v1155 = vadd.f32 %v1097, %v1099
    %1156 = vadd.xlane.f32.xlu0 %v1155
    %v1157 = vpop.xlane.xlu0 %1156
    %v1158 = vadd.f32 %v1101, %v1103
    %1159 = vadd.xlane.f32.xlu0 %v1158
    %v1160 = vpop.xlane.xlu0 %1159
    %v1161 = vadd.f32 %v1107, %v1109
    %1162 = vadd.xlane.f32.xlu0 %v1161
    %v1163 = vpop.xlane.xlu0 %1162
    %v1164 = vadd.f32 %v1111, %v1113
    %1165 = vadd.xlane.f32.xlu0 %v1164
    %v1166 = vpop.xlane.xlu0 %1165
    %v1167 = vadd.f32 %v1117, %v1119
    %1168 = vadd.xlane.f32.xlu0 %v1167
    %v1169 = vpop.xlane.xlu0 %1168
    %v1170 = vadd.f32 %v1121, %v1123
    %1171 = vadd.xlane.f32.xlu0 %v1170
    %v1172 = vpop.xlane.xlu0 %1171
    %v1173 = vmul.f32 %v1127, 0.00390625
    %v1174 = vmul.f32 %v1130, 0.00390625
    %v1175 = vmul.f32 %v1133, 0.00390625
    %v1176 = vmul.f32 %v1136, 0.00390625
    %v1177 = vmul.f32 %v1139, 0.00390625
    %v1178 = vmul.f32 %v1142, 0.00390625
    %v1179 = vmul.f32 %v1145, 0.00390625
    %v1180 = vmul.f32 %v1148, 0.00390625
    %v1181 = vmul.f32 %v1151, 0.00390625
    %v1182 = vmul.f32 %v1154, 0.00390625
    %v1183 = vmul.f32 %v1157, 0.00390625
    %v1184 = vmul.f32 %v1160, 0.00390625
    %v1185 = vmul.f32 %v1163, 0.00390625
    %v1186 = vmul.f32 %v1166, 0.00390625
    %v1187 = vmul.f32 %v1169, 0.00390625
    %v1188 = vmul.f32 %v1172, 0.00390625
    %v1189 = vsub.f32 %v1047, %v1173
    %v1190 = vsub.f32 %v1049, %v1173
    %v1191 = vsub.f32 %v1051, %v1174
    %v1192 = vsub.f32 %v1053, %v1174
    %v1193 = vsub.f32 %v1057, %v1175
    %v1194 = vsub.f32 %v1059, %v1175
    %v1195 = vsub.f32 %v1061, %v1176
    %v1196 = vsub.f32 %v1063, %v1176
    %v1197 = vsub.f32 %v1067, %v1177
    %v1198 = vsub.f32 %v1069, %v1177
    %v1199 = vsub.f32 %v1071, %v1178
    %v1200 = vsub.f32 %v1073, %v1178
    %v1201 = vsub.f32 %v1077, %v1179
    %v1202 = vsub.f32 %v1079, %v1179
    %v1203 = vsub.f32 %v1081, %v1180
    %v1204 = vsub.f32 %v1083, %v1180
    %v1205 = vsub.f32 %v1087, %v1181
    %v1206 = vsub.f32 %v1089, %v1181
    %v1207 = vsub.f32 %v1091, %v1182
    %v1208 = vsub.f32 %v1093, %v1182
    %v1209 = vsub.f32 %v1097, %v1183
    %v1210 = vsub.f32 %v1099, %v1183
    %v1211 = vsub.f32 %v1101, %v1184
    %v1212 = vsub.f32 %v1103, %v1184
    %v1213 = vsub.f32 %v1107, %v1185
    %v1214 = vsub.f32 %v1109, %v1185
    %v1215 = vsub.f32 %v1111, %v1186
    %v1216 = vsub.f32 %v1113, %v1186
    %v1217 = vsub.f32 %v1117, %v1187
    %v1218 = vsub.f32 %v1119, %v1187
    %v1219 = vsub.f32 %v1121, %v1188
    %v1220 = vsub.f32 %v1123, %v1188
    %v1221 = vmul.f32 %v1189, %v1189
    %v1222 = vmul.f32 %v1190, %v1190
    %v1223 = vmul.f32 %v1191, %v1191
    %v1224 = vmul.f32 %v1192, %v1192
    %v1225 = vmul.f32 %v1193, %v1193
    %v1226 = vmul.f32 %v1194, %v1194
    %v1227 = vmul.f32 %v1195, %v1195
    %v1228 = vmul.f32 %v1196, %v1196
    %v1229 = vmul.f32 %v1197, %v1197
    %v1230 = vmul.f32 %v1198, %v1198
    %v1231 = vmul.f32 %v1199, %v1199
    %v1232 = vmul.f32 %v1200, %v1200
    %v1233 = vmul.f32 %v1201, %v1201
    %v1234 = vmul.f32 %v1202, %v1202
    %v1235 = vmul.f32 %v1203, %v1203
    %v1236 = vmul.f32 %v1204, %v1204
    %v1237 = vmul.f32 %v1205, %v1205
    %v1238 = vmul.f32 %v1206, %v1206
    %v1239 = vmul.f32 %v1207, %v1207
    %v1240 = vmul.f32 %v1208, %v1208
    %v1241 = vmul.f32 %v1209, %v1209
    %v1242 = vmul.f32 %v1210, %v1210
    %v1243 = vmul.f32 %v1211, %v1211
    %v1244 = vmul.f32 %v1212, %v1212
    %v1245 = vmul.f32 %v1213, %v1213
    %v1246 = vmul.f32 %v1214, %v1214
    %v1247 = vmul.f32 %v1215, %v1215
    %v1248 = vmul.f32 %v1216, %v1216
    %v1249 = vmul.f32 %v1217, %v1217
    %v1250 = vmul.f32 %v1218, %v1218
    %v1251 = vmul.f32 %v1219, %v1219
    %v1252 = vmul.f32 %v1220, %v1220
    %v1253 = vadd.f32 %v1221, %v1222
    %1254 = vadd.xlane.f32.xlu0 %v1253
    %v1255 = vpop.xlane.xlu0 %1254
    %v1256 = vadd.f32 %v1223, %v1224
    %1257 = vadd.xlane.f32.xlu0 %v1256
    %v1258 = vpop.xlane.xlu0 %1257
    %v1259 = vadd.f32 %v1225, %v1226
    %1260 = vadd.xlane.f32.xlu0 %v1259
    %v1261 = vpop.xlane.xlu0 %1260
    %v1262 = vadd.f32 %v1227, %v1228
    %1263 = vadd.xlane.f32.xlu0 %v1262
    %v1264 = vpop.xlane.xlu0 %1263
    %v1265 = vadd.f32 %v1229, %v1230
    %1266 = vadd.xlane.f32.xlu0 %v1265
    %v1267 = vpop.xlane.xlu0 %1266
    %v1268 = vadd.f32 %v1231, %v1232
    %1269 = vadd.xlane.f32.xlu0 %v1268
    %v1270 = vpop.xlane.xlu0 %1269
    %v1271 = vadd.f32 %v1233, %v1234
    %1272 = vadd.xlane.f32.xlu0 %v1271
    %v1273 = vpop.xlane.xlu0 %1272
    %v1274 = vadd.f32 %v1235, %v1236
    %1275 = vadd.xlane.f32.xlu0 %v1274
    %v1276 = vpop.xlane.xlu0 %1275
    %v1277 = vadd.f32 %v1237, %v1238
    %1278 = vadd.xlane.f32.xlu0 %v1277
    %v1279 = vpop.xlane.xlu0 %1278
    %v1280 = vadd.f32 %v1239, %v1240
    %1281 = vadd.xlane.f32.xlu0 %v1280
    %v1282 = vpop.xlane.xlu0 %1281
    %v1283 = vadd.f32 %v1241, %v1242
    %1284 = vadd.xlane.f32.xlu0 %v1283
    %v1285 = vpop.xlane.xlu0 %1284
    %v1286 = vadd.f32 %v1243, %v1244
    %1287 = vadd.xlane.f32.xlu0 %v1286
    %v1288 = vpop.xlane.xlu0 %1287
    %v1289 = vadd.f32 %v1245, %v1246
    %1290 = vadd.xlane.f32.xlu0 %v1289
    %v1291 = vpop.xlane.xlu0 %1290
    %v1292 = vadd.f32 %v1247, %v1248
    %1293 = vadd.xlane.f32.xlu0 %v1292
    %v1294 = vpop.xlane.xlu0 %1293
    %v1295 = vadd.f32 %v1249, %v1250
    %1296 = vadd.xlane.f32.xlu0 %v1295
    %v1297 = vpop.xlane.xlu0 %1296
    %v1298 = vadd.f32 %v1251, %v1252
    %1299 = vadd.xlane.f32.xlu0 %v1298
    %v1300 = vpop.xlane.xlu0 %1299
    %v1301 = vmul.f32 %v1255, 0.00390625
    %v1302 = vmul.f32 %v1258, 0.00390625
    %v1303 = vmul.f32 %v1261, 0.00390625
    %v1304 = vmul.f32 %v1264, 0.00390625
    %v1305 = vmul.f32 %v1267, 0.00390625
    %v1306 = vmul.f32 %v1270, 0.00390625
    %v1307 = vmul.f32 %v1273, 0.00390625
    %v1308 = vmul.f32 %v1276, 0.00390625
    %v1309 = vmul.f32 %v1279, 0.00390625
    %v1310 = vmul.f32 %v1282, 0.00390625
    %v1311 = vmul.f32 %v1285, 0.00390625
    %v1312 = vmul.f32 %v1288, 0.00390625
    %v1313 = vmul.f32 %v1291, 0.00390625
    %v1314 = vmul.f32 %v1294, 0.00390625
    %v1315 = vmul.f32 %v1297, 0.00390625
    %v1316 = vmul.f32 %v1300, 0.00390625
    %v1317 = vadd.f32 %v1301, 1e-05
    %v1318 = vadd.f32 %v1302, 1e-05
    %v1319 = vadd.f32 %v1303, 1e-05
    %v1320 = vadd.f32 %v1304, 1e-05
    %v1321 = vadd.f32 %v1305, 1e-05
    %v1322 = vadd.f32 %v1306, 1e-05
    %v1323 = vadd.f32 %v1307, 1e-05
    %v1324 = vadd.f32 %v1308, 1e-05
    %v1325 = vadd.f32 %v1309, 1e-05
    %v1326 = vadd.f32 %v1310, 1e-05
    %v1327 = vadd.f32 %v1311, 1e-05
    %v1328 = vadd.f32 %v1312, 1e-05
    %v1329 = vadd.f32 %v1313, 1e-05
    %v1330 = vadd.f32 %v1314, 1e-05
    %v1331 = vadd.f32 %v1315, 1e-05
    %v1332 = vadd.f32 %v1316, 1e-05
    %v1333 = vrsqrt.pop %v1317
    %v1334 = vrsqrt.pop %v1318
    %v1335 = vrsqrt.pop %v1319
    %v1336 = vrsqrt.pop %v1320
    %v1337 = vrsqrt.pop %v1321
    %v1338 = vrsqrt.pop %v1322
    %v1339 = vrsqrt.pop %v1323
    %v1340 = vrsqrt.pop %v1324
    %v1341 = vrsqrt.pop %v1325
    %v1342 = vrsqrt.pop %v1326
    %v1343 = vrsqrt.pop %v1327
    %v1344 = vrsqrt.pop %v1328
    %v1345 = vrsqrt.pop %v1329
    %v1346 = vrsqrt.pop %v1330
    %v1347 = vrsqrt.pop %v1331
    %v1348 = vrsqrt.pop %v1332
    %v1349 = vmul.f32 %v1189, %v1333
    %v1350 = vmul.f32 %v1190, %v1333
    %v1351 = vmul.f32 %v1191, %v1334
    %v1352 = vmul.f32 %v1192, %v1334
    %v1353 = vmul.f32 %v1193, %v1335
    %v1354 = vmul.f32 %v1194, %v1335
    %v1355 = vmul.f32 %v1195, %v1336
    %v1356 = vmul.f32 %v1196, %v1336
    %v1357 = vmul.f32 %v1197, %v1337
    %v1358 = vmul.f32 %v1198, %v1337
    %v1359 = vmul.f32 %v1199, %v1338
    %v1360 = vmul.f32 %v1200, %v1338
    %v1361 = vmul.f32 %v1201, %v1339
    %v1362 = vmul.f32 %v1202, %v1339
    %v1363 = vmul.f32 %v1203, %v1340
    %v1364 = vmul.f32 %v1204, %v1340
    %v1365 = vmul.f32 %v1205, %v1341
    %v1366 = vmul.f32 %v1206, %v1341
    %v1367 = vmul.f32 %v1207, %v1342
    %v1368 = vmul.f32 %v1208, %v1342
    %v1369 = vmul.f32 %v1209, %v1343
    %v1370 = vmul.f32 %v1210, %v1343
    %v1371 = vmul.f32 %v1211, %v1344
    %v1372 = vmul.f32 %v1212, %v1344
    %v1373 = vmul.f32 %v1213, %v1345
    %v1374 = vmul.f32 %v1214, %v1345
    %v1375 = vmul.f32 %v1215, %v1346
    %v1376 = vmul.f32 %v1216, %v1346
    %v1377 = vmul.f32 %v1217, %v1347
    %v1378 = vmul.f32 %v1218, %v1347
    %v1379 = vmul.f32 %v1219, %v1348
    %v1380 = vmul.f32 %v1220, %v1348
    %s1381 = scalar_lea.vmem [#allocation7], 1
    %v1382 = vld [vmem:[%s1381] ss:$4 sm:$0x3]
    %v1384 = vlaneseq
    %v1385 = vshrl.u32 %v1384, 7
    %v1386 = vsub.s32 0, %v1385
    %v1387 = vrot.slane %v1382, %v1386
    %v1388 = vlaneseq
    %v1389 = vshrl.u32 %v1388, 7
    %v1390 = vsub.s32 1, %v1389
    %v1391 = vrot.slane %v1382, %v1390
    %v1394 = vmul.f32 %v1349, %v1387
    %v1395 = vmul.f32 %v1350, %v1391
    %v1396 = vmul.f32 %v1351, %v1387
    %v1397 = vmul.f32 %v1352, %v1391
    %v1398 = vmul.f32 %v1353, %v1387
    %v1399 = vmul.f32 %v1354, %v1391
    %v1400 = vmul.f32 %v1355, %v1387
    %v1401 = vmul.f32 %v1356, %v1391
    %v1402 = vmul.f32 %v1357, %v1387
    %v1403 = vmul.f32 %v1358, %v1391
    %v1404 = vmul.f32 %v1359, %v1387
    %v1405 = vmul.f32 %v1360, %v1391
    %v1406 = vmul.f32 %v1361, %v1387
    %v1407 = vmul.f32 %v1362, %v1391
    %v1408 = vmul.f32 %v1363, %v1387
    %v1409 = vmul.f32 %v1364, %v1391
    %v1410 = vmul.f32 %v1365, %v1387
    %v1411 = vmul.f32 %v1366, %v1391
    %v1412 = vmul.f32 %v1367, %v1387
    %v1413 = vmul.f32 %v1368, %v1391
    %v1414 = vmul.f32 %v1369, %v1387
    %v1415 = vmul.f32 %v1370, %v1391
    %v1416 = vmul.f32 %v1371, %v1387
    %v1417 = vmul.f32 %v1372, %v1391
    %v1418 = vmul.f32 %v1373, %v1387
    %v1419 = vmul.f32 %v1374, %v1391
    %v1420 = vmul.f32 %v1375, %v1387
    %v1421 = vmul.f32 %v1376, %v1391
    %v1422 = vmul.f32 %v1377, %v1387
    %v1423 = vmul.f32 %v1378, %v1391
    %v1424 = vmul.f32 %v1379, %v1387
    %v1425 = vmul.f32 %v1380, %v1391
    %s1426 = scalar_lea.vmem [#allocation7], 2
    %v1427 = vld [vmem:[%s1426] ss:$4 sm:$0x3]
    %v1429 = vlaneseq
    %v1430 = vshrl.u32 %v1429, 7
    %v1431 = vsub.s32 0, %v1430
    %v1432 = vrot.slane %v1427, %v1431
    %v1433 = vlaneseq
    %v1434 = vshrl.u32 %v1433, 7
    %v1435 = vsub.s32 1, %v1434
    %v1436 = vrot.slane %v1427, %v1435
    %v1439 = vadd.f32 %v1394, %v1432
    %v1440 = vadd.f32 %v1395, %v1436
    %v1441 = vadd.f32 %v1396, %v1432
    %v1442 = vadd.f32 %v1397, %v1436
    %v1443 = vadd.f32 %v1398, %v1432
    %v1444 = vadd.f32 %v1399, %v1436
    %v1445 = vadd.f32 %v1400, %v1432
    %v1446 = vadd.f32 %v1401, %v1436
    %v1447 = vadd.f32 %v1402, %v1432
    %v1448 = vadd.f32 %v1403, %v1436
    %v1449 = vadd.f32 %v1404, %v1432
    %v1450 = vadd.f32 %v1405, %v1436
    %v1451 = vadd.f32 %v1406, %v1432
    %v1452 = vadd.f32 %v1407, %v1436
    %v1453 = vadd.f32 %v1408, %v1432
    %v1454 = vadd.f32 %v1409, %v1436
    %v1455 = vadd.f32 %v1410, %v1432
    %v1456 = vadd.f32 %v1411, %v1436
    %v1457 = vadd.f32 %v1412, %v1432
    %v1458 = vadd.f32 %v1413, %v1436
    %v1459 = vadd.f32 %v1414, %v1432
    %v1460 = vadd.f32 %v1415, %v1436
    %v1461 = vadd.f32 %v1416, %v1432
    %v1462 = vadd.f32 %v1417, %v1436
    %v1463 = vadd.f32 %v1418, %v1432
    %v1464 = vadd.f32 %v1419, %v1436
    %v1465 = vadd.f32 %v1420, %v1432
    %v1466 = vadd.f32 %v1421, %v1436
    %v1467 = vadd.f32 %v1422, %v1432
    %v1468 = vadd.f32 %v1423, %v1436
    %v1469 = vadd.f32 %v1424, %v1432
    %v1470 = vadd.f32 %v1425, %v1436
    %1471 = vst [vmem:[#allocation8] sm:$0xff] %v1439
    %1472 = vst [vmem:[#allocation8 + $0x8] sm:$0xff] %v1440
    %1473 = vst [vmem:[#allocation8 + $0x10] sm:$0xff] %v1441
    %1474 = vst [vmem:[#allocation8 + $0x18] sm:$0xff] %v1442
    %1475 = vst [vmem:[#allocation8 + $0x20] sm:$0xff] %v1443
    %1476 = vst [vmem:[#allocation8 + $0x28] sm:$0xff] %v1444
    %1477 = vst [vmem:[#allocation8 + $0x30] sm:$0xff] %v1445
    %1478 = vst [vmem:[#allocation8 + $0x38] sm:$0xff] %v1446
    %1479 = vst [vmem:[#allocation8 + $0x40] sm:$0xff] %v1447
    %1480 = vst [vmem:[#allocation8 + $0x48] sm:$0xff] %v1448
    %1481 = vst [vmem:[#allocation8 + $0x50] sm:$0xff] %v1449
    %1482 = vst [vmem:[#allocation8 + $0x58] sm:$0xff] %v1450
    %1483 = vst [vmem:[#allocation8 + $0x60] sm:$0xff] %v1451
    %1484 = vst [vmem:[#allocation8 + $0x68] sm:$0xff] %v1452
    %1485 = vst [vmem:[#allocation8 + $0x70] sm:$0xff] %v1453
    %1486 = vst [vmem:[#allocation8 + $0x78] sm:$0xff] %v1454
    %1487 = vst [vmem:[#allocation8 + $0x80] sm:$0xff] %v1455
    %1488 = vst [vmem:[#allocation8 + $0x88] sm:$0xff] %v1456
    %1489 = vst [vmem:[#allocation8 + $0x90] sm:$0xff] %v1457
    %1490 = vst [vmem:[#allocation8 + $0x98] sm:$0xff] %v1458
    %1491 = vst [vmem:[#allocation8 + $0xa0] sm:$0xff] %v1459
    %1492 = vst [vmem:[#allocation8 + $0xa8] sm:$0xff] %v1460
    %1493 = vst [vmem:[#allocation8 + $0xb0] sm:$0xff] %v1461
    %1494 = vst [vmem:[#allocation8 + $0xb8] sm:$0xff] %v1462
    %1495 = vst [vmem:[#allocation8 + $0xc0] sm:$0xff] %v1463
    %1496 = vst [vmem:[#allocation8 + $0xc8] sm:$0xff] %v1464
    %1497 = vst [vmem:[#allocation8 + $0xd0] sm:$0xff] %v1465
    %1498 = vst [vmem:[#allocation8 + $0xd8] sm:$0xff] %v1466
    %1499 = vst [vmem:[#allocation8 + $0xe0] sm:$0xff] %v1467
    %1500 = vst [vmem:[#allocation8 + $0xe8] sm:$0xff] %v1468
    %1501 = vst [vmem:[#allocation8 + $0xf0] sm:$0xff] %v1469
    %1502 = vst [vmem:[#allocation8 + $0xf8] sm:$0xff] %v1470
    // Predicated region
    $region26: #{proj_layernorm.1} parent=1 // pred_check
      _
    $region27: #{proj_layernorm.1} parent=1 // pred_check_branch
      %1504 = sbr.rel (0) target = $region29
    $region28: #{proj_layernorm.1} parent=1 // pred_region
      %s1506 = ssub.s32 4096, 256
      %1507 = vsyncadd [#allocation4], %s1506
      %s1508 = sshll.u32 [#allocation8], 4
      %s1509 = int_to_ptr.vmem [resolvable:$true] %s1508
      %1514 = dma.vmem_to_hbm [thread:$0]  %s1509, 256, %s3, [#allocation4], 256, 256, 16
    $region29: #{proj_layernorm.1} parent=1 // pred_fallthru
      _
    // Predicated region
    $region30: #{proj_layernorm.1} parent=1 // pred_check
      _
    $region31: #{proj_layernorm.1} parent=1 // pred_check_branch
      %1516 = sbr.rel (0) target = $region33
    $region32: #{proj_layernorm.1} parent=1 // pred_region
      %1517 = dma.done [#allocation4], 4096
    $region33: #{proj_layernorm.1} parent=1 // pred_fallthru
      _
    %1518 = vsyncpa [#allocation3], 1
    %1519 = vsyncpa [#allocation6], 1
    %1520 = vsyncpa [#allocation4], 1

</llo_original>
